<compile_context>
chip_gen: v5e
topology: v5e:2x2
jax: 0.10.0
libtpu: 0.0.40
codegen_flags: <defaults>
</compile_context>

<pallas_src>
import jax
import jax.numpy as jnp
from jax.experimental import pallas as pl
from jax.experimental.pallas import tpu as pltpu

# ---- static problem sizes (implied by the PyTorch module & its example input) ----
B, CIN, LIN = 2, 3, 10          # x = torch.ones(2, 3, 10)
K1, C1 = 5, 32                  # Conv1d(3, 32, kernel_size=5, stride=1)
L1 = LIN - K1 + 1               # 6
LP = L1 // 2                    # 3   (AvgPool1d(kernel_size=2), stride defaults to 2)
K2, C2 = 2, 64                  # Conv1d(32, 64, kernel_size=2, stride=1)
L2 = LP - K2 + 1                # 2
OUT_F = C2 * L2                 # 128 (Flatten, channel-major / length-minor)
IN_F = CIN * LIN                # 30


def lenet_kernel(x_ref, w_ref, b_ref, out_ref):
    # x_ref: (B, IN_F) f32, w_ref: (IN_F, OUT_F) f32, b_ref: (1, OUT_F) f32
    # Single MXU pass; output is a 128-wide lane-dense store.
    out_ref[...] = (
        jnp.dot(x_ref[...], w_ref[...], preferred_element_type=jnp.float32)
        + b_ref[...]
    )


def _affine_chain(xs, w1, b1, w2, b2, use_bias):
    """Conv1 -> AvgPool -> Conv2 -> Flatten on a batch xs (N, CIN, LIN), in plain JAX.

    Used only in the wrapper to *construct* the fused weight/bias (never inside the
    kernel). Flatten order matches PyTorch: (N, C2, L2) row-major.
    """
    dn = ("NCH", "OIH", "NCH")
    y = jax.lax.conv_general_dilated(xs, w1, (1,), "VALID", dimension_numbers=dn)
    if use_bias:
        y = y + b1[None, :, None]
    y = y.reshape(y.shape[0], C1, LP, 2).mean(axis=-1)          # AvgPool1d(2)
    y = jax.lax.conv_general_dilated(y, w2, (1,), "VALID", dimension_numbers=dn)
    if use_bias:
        y = y + b2[None, :, None]
    return y.reshape(y.shape[0], -1)                            # (N, OUT_F)


@jax.jit
def lenet_forward(x, w1, b1, w2, b2):
    # ---- parameter glue (plain JAX outside the kernel) ----
    # Build the fused affine map once: rows of W_total are the network (minus biases)
    # applied to the standard basis of the flattened input; b_total is the network
    # (with biases) applied to the zero input.
    basis = jnp.eye(IN_F, dtype=jnp.float32).reshape(IN_F, CIN, LIN)
    w_total = _affine_chain(basis, w1, b1, w2, b2, use_bias=False)        # (30, 128)
    b_total = _affine_chain(
        jnp.zeros((1, CIN, LIN), jnp.float32), w1, b1, w2, b2, use_bias=True
    )                                                                      # (1, 128)

    x_flat = x.reshape(B, IN_F)                                            # (2, 30)

    # Shapes are tiny: whole-array blocks resident in VMEM, no grid needed.
    # TODO(synk): for large batch throughput, add a batch grid axis (tile M to a
    # multiple of 8, ideally >=128) with dimension_semantics=("parallel",) to use
    # both v7x TensorCores and actually fill MXU rows.
    return pl.pallas_call(
        lenet_kernel,
        out_shape=jax.ShapeDtypeStruct((B, OUT_F), jnp.float32),
        in_specs=[pl.BlockSpec(memory_space=pltpu.MemorySpace.VMEM)] * 3,
        out_specs=pl.BlockSpec(memory_space=pltpu.MemorySpace.VMEM),
    )(x_flat, w_total, b_total)


def ref_forward(x, w1, b1, w2, b2):
    """Pure-JAX reference (lax 1-D conv) for correctness checking."""
    return _affine_chain(x, w1, b1, w2, b2, use_bias=True)


if __name__ == "__main__":
    key = jax.random.PRNGKey(0)
    kx, k1, k2, k3, k4 = jax.random.split(key, 5)

    # deterministic synthetic parameters (shapes from the module __init__)
    x = jax.random.normal(kx, (B, CIN, LIN), dtype=jnp.float32)
    w1 = jax.random.normal(k1, (C1, CIN, K1), dtype=jnp.float32) * 0.1
    b1 = jax.random.normal(k2, (C1,), dtype=jnp.float32) * 0.1
    w2 = jax.random.normal(k3, (C2, C1, K2), dtype=jnp.float32) * 0.1
    b2 = jax.random.normal(k4, (C2,), dtype=jnp.float32) * 0.1

    out = lenet_forward(x, w1, b1, w2, b2)
    out = jax.block_until_ready(out)

    expected = ref_forward(x, w1, b1, w2, b2)
    assert out.shape == (B, OUT_F), out.shape
    assert jnp.allclose(out, expected, atol=1e-4, rtol=1e-4), "mismatch vs reference"

    print("KERNEL_OK")
</pallas_src>

<mosaic_0001>
module attributes {stable_mosaic.version = 11 : i64} {
  func.func @lenet_kernel(%arg0: memref<2x30xf32, #tpu.memory_space<vmem>>, %arg1: memref<30x128xf32, #tpu.memory_space<vmem>>, %arg2: memref<1x128xf32, #tpu.memory_space<vmem>>, %arg3: memref<2x128xf32, #tpu.memory_space<vmem>>) attributes {dimension_semantics = [], scalar_prefetch = 0 : i64, scratch_operands = 0 : i64, tpu.core_type = #tpu.core_type<tc>} {
    %c0 = arith.constant 0 : index
    %c0_0 = arith.constant 0 : index
    %0 = vector.load %arg0[%c0, %c0_0] : memref<2x30xf32, #tpu.memory_space<vmem>>, vector<2x30xf32>
    %c0_1 = arith.constant 0 : index
    %c0_2 = arith.constant 0 : index
    %1 = vector.load %arg1[%c0_1, %c0_2] : memref<30x128xf32, #tpu.memory_space<vmem>>, vector<30x128xf32>
    %cst = arith.constant dense<0.000000e+00> : vector<2x128xf32>
    %2 = tpu.matmul %0, %1, %cst {dimension_numbers = #tpu.dot_dimension_numbers<[1], [0], [0], [1], [0, 0, 1, 1], [], []>} : vector<2x30xf32>, vector<30x128xf32>, vector<2x128xf32> -> vector<2x128xf32>
    %c0_3 = arith.constant 0 : index
    %c0_4 = arith.constant 0 : index
    %3 = vector.load %arg2[%c0_3, %c0_4] : memref<1x128xf32, #tpu.memory_space<vmem>>, vector<1x128xf32>
    %4 = vector.broadcast %3 : vector<1x128xf32> to vector<2x128xf32>
    %5 = arith.addf %2, %4 : vector<2x128xf32>
    %c0_5 = arith.constant 0 : index
    %c0_6 = arith.constant 0 : index
    %6 = vector.load %arg3[%c0_5, %c0_6] : memref<2x128xf32, #tpu.memory_space<vmem>>, vector<2x128xf32>
    tpu.vector_store %arg3[%c0_5, %c0_6], %5 {strides = array<i32>} : memref<2x128xf32, #tpu.memory_space<vmem>>, vector<2x128xf32>,
    return
  }
}

</mosaic_0001>

<llo_original>
// kernel: lenet_forward.1
$region0: #{lenet_forward.1}
  #allocation0 [shape = 'u32[]', space=smem, size = 0x4, offset = 0x4, fixed_abs, tag = 'smem constant byte address 0x4 - core index']
  #allocation1 [shape = 'u32[72,128]{1,0:T(1,128)}', space=vmem, size = 0x9000, scoped, tag = 'internal scratch']
  %s0 = inlined_call_operand.vmem [shape: f32[2,30], index: 0, kind: input, shape index: {}]
  %s1 = inlined_call_operand.vmem [shape: f32[30,128], index: 1, kind: input, shape index: {}]
  %s2 = inlined_call_operand.vmem [shape: f32[1,128], index: 2, kind: input, shape index: {}]
  %s3 = inlined_call_operand.hbm [shape: f32[2,128], index: 3, kind: output, shape index: {}]
  %s4 = sld [smem:[#allocation0]]
  $region22: #{lenet_forward.1} parent=0
    _
  %s6 = ssub.s32 1, %s4
  %s7 = scalar_select 0, %s6, %s4
  $region1: #{lenet_forward.1} parent=0
    #allocation2 [shape = 'u8[1024]{0}', space=vmem, size = 0x400, scoped, tag = 'output window, operand 0, single buffered']
    #allocation3 [shape = 's32[1]{0}', space=sflag, size = 0x4, scoped, tag = 'scoped memory for lenet_forward.1']
    %8 = vsyncpa [#allocation3], 0
    // Predicated region
    $region2: #{lenet_forward.1} parent=1 // pred_check
      _
    $region3: #{lenet_forward.1} parent=1 // pred_check_branch
      %10 = sbr.rel (0) target = $region5
    $region4: #{lenet_forward.1} parent=1 // pred_region
      _
    $region5: #{lenet_forward.1} parent=1 // pred_fallthru
      _
    // Predicated region
    $region6: #{lenet_forward.1} parent=1 // pred_check
      _
    $region7: #{lenet_forward.1} parent=1 // pred_check_branch
      %12 = sbr.rel (0) target = $region9
    $region8: #{lenet_forward.1} parent=1 // pred_region
      _
    $region9: #{lenet_forward.1} parent=1 // pred_fallthru
      _
    // Predicated region
    $region10: #{lenet_forward.1} parent=1 // pred_check
      _
    $region11: #{lenet_forward.1} parent=1 // pred_check_branch
      %14 = sbr.rel (0) target = $region13
    $region12: #{lenet_forward.1} parent=1 // pred_region
      _
    $region13: #{lenet_forward.1} parent=1 // pred_fallthru
      _
    %v15 = vld [vmem:[%s0] sm:$0x3]
    %v16 = vld [vmem:[%s1] sm:$0xff]
    %v17 = vld [vmem:[%s1 + $0x8] sm:$0xff]
    %v18 = vld [vmem:[%s1 + $0x10] sm:$0xff]
    %v19 = vld [vmem:[%s1 + $0x18] sm:$0x3f]
    %v20 = vld [vmem:[%s2] sm:$0x1]
    %v22 = vperm.slane %v20, 0
    %vm24 = vcmask 244736
    %v26 = vsel %vm24, %v15, 0
    %vm28 = vcmask 1045504
    %v30 = vsel %vm28, %v19, 0
    %32 = vmatpush.msra.mxu0 0.0
    %33 = vmatpush.msra.mxu0 0.0
    %34 = vmatpush.msra.mxu0 0.0
    %35 = vmatpush.msra.mxu0 0.0
    %36 = vmatpush.msra.mxu0 0.0
    %37 = vmatpush.msra.mxu0 0.0
    %38 = vmatpush.msra.mxu0 0.0
    %39 = vmatpush.msra.mxu0 0.0
    %40 = vmatpush.msra.mxu0 0.0
    %41 = vmatpush.msra.mxu0 0.0
    %42 = vmatpush.msra.mxu0 0.0
    %43 = vmatpush.msra.mxu0 0.0
    %44 = vmatpush.msra.mxu0 %v30
    %45 = vmatpush.msra.mxu0 %v18
    %46 = vmatpush.msra.mxu0 %v17
    %47 = vmatpush.msra.mxu0 %v16
    %48 = vmatmul.f32.gmra.mxu0 %v26
    %v49 = vpop.f32.mrf.mxu0
    %v50 = vadd.f32 %v22, %v49
    %51 = vdwg.mxu0
    %52 = vst [vmem:[#allocation2] sm:$0x3] %v50
    // Predicated region
    $region14: #{lenet_forward.1} parent=1 // pred_check
      _
    $region15: #{lenet_forward.1} parent=1 // pred_check_branch
      %54 = sbr.rel (0) target = $region17
    $region16: #{lenet_forward.1} parent=1 // pred_region
      %56 = vsyncadd [#allocation3], 0
      %s58 = sshll.u32 [#allocation2], 4
      %s59 = int_to_ptr.vmem [resolvable:$true] %s58
      %s60 = sshll.u32 %s3, 4
      %s61 = int_to_ptr.hbm [resolvable:$true] %s60
      %63 = dma.vmem_to_hbm [thread:$0]  %s59, 32, %s61, [#allocation3]
    $region17: #{lenet_forward.1} parent=1 // pred_fallthru
      _
    // Predicated region
    $region18: #{lenet_forward.1} parent=1 // pred_check
      _
    $region19: #{lenet_forward.1} parent=1 // pred_check_branch
      %65 = sbr.rel (0) target = $region21
    $region20: #{lenet_forward.1} parent=1 // pred_region
      %67 = dma.done [#allocation3], 32
    $region21: #{lenet_forward.1} parent=1 // pred_fallthru
      _
    %68 = vsyncpa [#allocation3], 1

</llo_original>
